<compile_context>
chip_gen: v6e
topology: v6e:2x2x1
jax: 0.10.0
libtpu: 0.0.40
codegen_flags: <defaults>
</compile_context>

<pallas_src>
import functools

import jax
import jax.numpy as jnp
from jax.experimental import pallas as pl
from jax.experimental.pallas import tpu as pltpu

_TILE_B = 32 * 1024          # default batch tile (rows); multiple of 128 (lane width)
_MIN_TILE_B = 256            # smallest lane-dense tile we bother with
_SMALL_BATCH_BYPASS = 512    # below this, kernel launch + DMA setup dwarfs the work


def _round_up(n, m):
    return ((n + m - 1) // m) * m


def _classifier_kernel(xt_ref, w2_ref, b2_ref, w3_ref, b3_ref, o_ref):
    """One batch tile, batch-on-lanes.

    xt_ref: (32, TILE_B)  input tile, x transposed (features on sublanes, batch on lanes)
    w2_ref: (8, 32)       torch layout (out, in) -- resident across grid steps
    b2_ref: (8, 1)        resident
    w3_ref: (8, 1)        l3 weight as a column -- resident
    b3_ref: (1, 1)        resident
    o_ref : (1, TILE_B)   lane-dense sigmoid output
    """
    # Layer 1 on the MXU: (8, 32) @ (32, TILE_B) -> (8, TILE_B), f32 accumulate.
    h = jnp.dot(w2_ref[...], xt_ref[...], preferred_element_type=jnp.float32)
    h = jnp.maximum(h + b2_ref[...], 0.0)                       # ReLU, bias broadcast over lanes

    # Layer 2 (8 -> 1) on the VPU + sublane reduce (XLU); avoids an N=1 MXU matmul.
    z = jnp.sum(h * w3_ref[...], axis=0, keepdims=True) + b3_ref[...]   # (1, TILE_B)
    z = jnp.maximum(z, 0.0)                                              # ReLU

    # Sigmoid, lane-dense: exp on the EUP, reciprocal via pl.reciprocal.
    # (approx=True would push the reciprocal fully onto the EUP approx path at ~1e-4 accuracy
    #  cost; exact mode keeps bit-level agreement with the reference and is free under the
    #  HBM bound.)
    o_ref[...] = pl.reciprocal(1.0 + jnp.exp(-z), approx=False)


def _classifier_pallas(x, w2, b2, w3, b3, tile_b):
    B = x.shape[0]
    tile_b = max(_MIN_TILE_B, _round_up(tile_b, 128))
    b_pad = _round_up(max(B, 1), tile_b)
    n_tiles = pl.cdiv(b_pad, tile_b)

    # Wrapper-side layout plumbing: pad the partial tile and put batch on the lane axis.
    x = x.astype(jnp.float32)
    x_t = jnp.pad(x, ((0, b_pad - B), (0, 0))).T                # (32, b_pad)

    w2 = w2.astype(jnp.float32).reshape(8, 32)                  # torch (out, in) layout
    b2c = b2.astype(jnp.float32).reshape(8, 1)
    w3c = w3.astype(jnp.float32).reshape(8, 1)                  # (1, 8) -> column
    b3c = b3.astype(jnp.float32).reshape(1, 1)

    y = pl.pallas_call(
        _classifier_kernel,
        out_shape=jax.ShapeDtypeStruct((1, b_pad), jnp.float32),
        grid=(n_tiles,),
        in_specs=[
            pl.BlockSpec((32, tile_b), lambda i: (0, i)),       # x^T batch tile (pipelined)
            pl.BlockSpec((8, 32), lambda i: (0, 0)),            # w2: resident (constant index)
            pl.BlockSpec((8, 1), lambda i: (0, 0)),             # b2: resident
            pl.BlockSpec((8, 1), lambda i: (0, 0)),             # w3: resident
            pl.BlockSpec((1, 1), lambda i: (0, 0)),             # b3: resident
        ],
        out_specs=pl.BlockSpec((1, tile_b), lambda i: (0, i)),  # lane-dense output
        compiler_params=pltpu.CompilerParams(
            # batch tiles are independent -> shard across v7x's 2 TensorCores (no-op on v5e/v6e)
            dimension_semantics=("parallel",),
            # explicit cap so the same tile size is safe against v7x's 64 MiB VMEM
            vmem_limit_bytes=32 * 1024 * 1024,
        ),
    )(x_t, w2, b2c, w3c, b3c)

    return y[0, :B].reshape(B, 1)


def classifier_shifted(x, w2, b2, w3, b3, *, tile_b=None, force_pallas=False):
    """Forward pass of ClassifierShifted.

    x : (B, 32) float32
    w2: (8, 32), b2: (8,)   -- torch Linear(32, 8) layout
    w3: (1, 8),  b3: (1,)   -- torch Linear(8, 1) layout
    returns (B, 1) float32 in [0.5, 1)  (ReLU before Sigmoid, as in the PyTorch module)
    """
    B = x.shape[0]
    if not force_pallas and B < _SMALL_BATCH_BYPASS:
        # Tiny batch: the whole problem is ~KiB; let XLA fuse it (kernel launch would dominate).
        h = jnp.maximum(x @ w2.T + b2[None, :], 0.0)
        z = jnp.maximum(h @ w3.T + b3[None, :], 0.0)
        return jax.nn.sigmoid(z)

    if tile_b is None:
        # Large default tile for DMA-burst efficiency / per-step overhead amortization,
        # but don't over-pad small batches.
        tile_b = min(_TILE_B, _round_up(max(B, 1), _MIN_TILE_B))
    return _classifier_pallas(x, w2, b2, w3, b3, tile_b)


def _init_params(key):
    # Deterministic init mirroring PyTorch Linear defaults: U(-1/sqrt(fan_in), 1/sqrt(fan_in)).
    k1, k2, k3, k4 = jax.random.split(key, 4)
    bound2 = 1.0 / jnp.sqrt(32.0)
    bound3 = 1.0 / jnp.sqrt(8.0)
    w2 = jax.random.uniform(k1, (8, 32), jnp.float32, -bound2, bound2)   # (out, in)
    b2 = jax.random.uniform(k2, (8,), jnp.float32, -bound2, bound2)
    w3 = jax.random.uniform(k3, (1, 8), jnp.float32, -bound3, bound3)
    b3 = jax.random.uniform(k4, (1,), jnp.float32, -bound3, bound3)
    return w2, b2, w3, b3


if __name__ == "__main__":
    key = jax.random.PRNGKey(0)
    kx1, kx2, kp = jax.random.split(key, 3)
    w2, b2, w3, b3 = _init_params(kp)

    def ref_forward(x):
        # Same decomposition as the kernel (MXU matmul for layer 1, exact f32 elementwise
        # weighted sum for layer 2) so the comparison isolates the Pallas lowering.
        h = jnp.maximum(jnp.dot(x, w2.T, preferred_element_type=jnp.float32) + b2[None, :], 0.0)
        z = jnp.maximum(jnp.sum(h * w3[0][None, :], axis=-1, keepdims=True) + b3[None, :], 0.0)
        return jax.nn.sigmoid(z)

    # 1) Small batch, forced through the Pallas kernel (single padded tile).
    B1 = 8
    x1 = jax.random.normal(kx1, (B1, 32), jnp.float32)
    out1 = classifier_shifted(x1, w2, b2, w3, b3, force_pallas=True)
    jax.block_until_ready(out1)
    assert out1.shape == (B1, 1)
    assert jnp.allclose(out1, ref_forward(x1), atol=1e-4, rtol=1e-4)

    # 2) Non-tile-aligned batch: exercises the multi-step grid, resident params and the
    #    partial-tile padding/unpadding path (tile_b kept small so the test stays tiny).
    B2 = 1000
    x2 = jax.random.normal(kx2, (B2, 32), jnp.float32)
    out2 = classifier_shifted(x2, w2, b2, w3, b3, tile_b=256)
    jax.block_until_ready(out2)
    assert out2.shape == (B2, 1)
    assert jnp.allclose(out2, ref_forward(x2), atol=1e-4, rtol=1e-4)

    print("KERNEL_OK")
</pallas_src>

<mosaic_0001>
module attributes {stable_mosaic.version = 11 : i64} {
  func.func @_classifier_kernel(%arg0: i32, %arg1: memref<32x256xf32, #tpu.memory_space<vmem>>, %arg2: memref<8x32xf32, #tpu.memory_space<vmem>>, %arg3: memref<8x1xf32, #tpu.memory_space<vmem>>, %arg4: memref<8x1xf32, #tpu.memory_space<vmem>>, %arg5: memref<1x1xf32, #tpu.memory_space<vmem>>, %arg6: memref<1x256xf32, #tpu.memory_space<vmem>>) attributes {dimension_semantics = [#tpu.dimension_semantics<parallel>], iteration_bounds = array<i64: 1>, scalar_prefetch = 0 : i64, scratch_operands = 0 : i64, tpu.core_type = #tpu.core_type<tc>, window_params = [{transform_indices = @transform_0, window_bounds = array<i64: 32, 256>}, {pipeline_mode = #tpu.pipeline_mode<synchronous>, transform_indices = @transform_1, window_bounds = array<i64: 8, 32>}, {pipeline_mode = #tpu.pipeline_mode<synchronous>, transform_indices = @transform_2, window_bounds = array<i64: 8, 1>}, {pipeline_mode = #tpu.pipeline_mode<synchronous>, transform_indices = @transform_3, window_bounds = array<i64: 8, 1>}, {pipeline_mode = #tpu.pipeline_mode<synchronous>, transform_indices = @transform_4, window_bounds = array<i64: 1, 1>}, {transform_indices = @transform_5, window_bounds = array<i64: 1, 256>}]} {
    %c0 = arith.constant 0 : index
    %c0_0 = arith.constant 0 : index
    %0 = vector.load %arg2[%c0, %c0_0] : memref<8x32xf32, #tpu.memory_space<vmem>>, vector<8x32xf32>
    %c0_1 = arith.constant 0 : index
    %c0_2 = arith.constant 0 : index
    %1 = vector.load %arg1[%c0_1, %c0_2] : memref<32x256xf32, #tpu.memory_space<vmem>>, vector<32x256xf32>
    %cst = arith.constant dense<0.000000e+00> : vector<8x256xf32>
    %2 = tpu.matmul %0, %1, %cst {dimension_numbers = #tpu.dot_dimension_numbers<[1], [0], [0], [1], [0, 0, 1, 1], [], []>} : vector<8x32xf32>, vector<32x256xf32>, vector<8x256xf32> -> vector<8x256xf32>
    %c0_3 = arith.constant 0 : index
    %c0_4 = arith.constant 0 : index
    %3 = vector.load %arg3[%c0_3, %c0_4] : memref<8x1xf32, #tpu.memory_space<vmem>>, vector<8x1xf32>
    %4 = vector.broadcast %3 : vector<8x1xf32> to vector<8x256xf32>
    %5 = arith.addf %2, %4 : vector<8x256xf32>
    %cst_5 = arith.constant 0.000000e+00 : f32
    %6 = vector.broadcast %cst_5 : f32 to vector<8x256xf32>
    %7 = arith.maximumf %5, %6 : vector<8x256xf32>
    %c0_6 = arith.constant 0 : index
    %c0_7 = arith.constant 0 : index
    %8 = vector.load %arg4[%c0_6, %c0_7] : memref<8x1xf32, #tpu.memory_space<vmem>>, vector<8x1xf32>
    %9 = vector.broadcast %8 : vector<8x1xf32> to vector<8x256xf32>
    %10 = arith.mulf %7, %9 : vector<8x256xf32>
    %cst_8 = arith.constant dense<0.000000e+00> : vector<256xf32>
    %11 = vector.multi_reduction <add>, %10, %cst_8 [0] : vector<8x256xf32> to vector<256xf32>
    %12 = vector.shape_cast %11 : vector<256xf32> to vector<1x256xf32>
    %c0_9 = arith.constant 0 : index
    %c0_10 = arith.constant 0 : index
    %13 = vector.load %arg5[%c0_9, %c0_10] : memref<1x1xf32, #tpu.memory_space<vmem>>, vector<1x1xf32>
    %14 = vector.broadcast %13 : vector<1x1xf32> to vector<1x256xf32>
    %15 = arith.addf %12, %14 : vector<1x256xf32>
    %cst_11 = arith.constant 0.000000e+00 : f32
    %16 = vector.broadcast %cst_11 : f32 to vector<1x256xf32>
    %17 = arith.maximumf %15, %16 : vector<1x256xf32>
    %cst_12 = arith.constant 0.000000e+00 : f32
    %18 = vector.broadcast %cst_12 : f32 to vector<1x256xf32>
    %19 = arith.subf %18, %17 : vector<1x256xf32>
    %20 = math.exp %19 : vector<1x256xf32>
    %cst_13 = arith.constant 1.000000e+00 : f32
    %21 = vector.broadcast %cst_13 : f32 to vector<1x256xf32>
    %22 = arith.addf %21, %20 : vector<1x256xf32>
    %23 = tpu.reciprocal %22 : vector<1x256xf32> -> vector<1x256xf32>
    %c0_14 = arith.constant 0 : index
    %c0_15 = arith.constant 0 : index
    %24 = vector.load %arg6[%c0_14, %c0_15] : memref<1x256xf32, #tpu.memory_space<vmem>>, vector<1x256xf32>
    tpu.vector_store %arg6[%c0_14, %c0_15], %23 {strides = array<i32>} : memref<1x256xf32, #tpu.memory_space<vmem>>, vector<1x256xf32>,
    return
  }
  func.func @transform_0(%arg0: i32) -> (i32, i32) {
    %c0_i32 = arith.constant 0 : i32
    %c0_i32_0 = arith.constant 0 : i32
    return %c0_i32, %arg0 : i32, i32
  }
  func.func @transform_1(%arg0: i32) -> (i32, i32) {
    %c0_i32 = arith.constant 0 : i32
    %c0_i32_0 = arith.constant 0 : i32
    %c0_i32_1 = arith.constant 0 : i32
    return %c0_i32, %c0_i32_0 : i32, i32
  }
  func.func @transform_2(%arg0: i32) -> (i32, i32) {
    %c0_i32 = arith.constant 0 : i32
    %c0_i32_0 = arith.constant 0 : i32
    %c0_i32_1 = arith.constant 0 : i32
    return %c0_i32, %c0_i32_0 : i32, i32
  }
  func.func @transform_3(%arg0: i32) -> (i32, i32) {
    %c0_i32 = arith.constant 0 : i32
    %c0_i32_0 = arith.constant 0 : i32
    %c0_i32_1 = arith.constant 0 : i32
    return %c0_i32, %c0_i32_0 : i32, i32
  }
  func.func @transform_4(%arg0: i32) -> (i32, i32) {
    %c0_i32 = arith.constant 0 : i32
    %c0_i32_0 = arith.constant 0 : i32
    %c0_i32_1 = arith.constant 0 : i32
    return %c0_i32, %c0_i32_0 : i32, i32
  }
  func.func @transform_5(%arg0: i32) -> (i32, i32) {
    %c0_i32 = arith.constant 0 : i32
    %c0_i32_0 = arith.constant 0 : i32
    return %c0_i32, %arg0 : i32, i32
  }
}

</mosaic_0001>

<llo_original>
// kernel: tpu_custom_call.1
$region0: #{tpu_custom_call.1}
  #allocation0 [shape = 'u32[]', space=smem, size = 0x4, offset = 0x4, fixed_abs, tag = 'smem constant byte address 0x4 - core index']
  #allocation1 [shape = 'u32[144,128]{1,0:T(1,128)}', space=vmem, size = 0x12000, scoped, tag = 'internal scratch']
  #allocation2 [shape = 'f32[1,1]{1,0:T(1,128)S(1)}', space=vmem, size = 0x200, scoped, tag = 'scoped memory for tpu_custom_call.1']
  %s0 = inlined_call_operand.hbm [shape: f32[32,256], index: 0, kind: input, shape index: {}]
  %s1 = inlined_call_operand.vmem [shape: f32[8,32], index: 1, kind: input, shape index: {}]
  %s2 = inlined_call_operand.vmem [shape: f32[8,1], index: 2, kind: input, shape index: {}]
  %s3 = inlined_call_operand.vmem [shape: f32[8,1], index: 3, kind: input, shape index: {}]
  %s4 = inlined_call_operand.<no memory space> [shape: f32[1,1], index: 4, kind: input, shape index: {}]
  %s5 = inlined_call_operand.hbm [shape: f32[1,256], index: 5, kind: output, shape index: {}]
  %s6 = sld [smem:[#allocation0]]
  $region34: #{tpu_custom_call.1} parent=0
    _
  %s8 = ssub.s32 1, %s6
  %s9 = scalar_select 0, %s8, %s6
  %v10 = vstv %s4
  %11 = vst [vmem:[#allocation2] sm:$0x1] %v10
  $region1: #{tpu_custom_call.1} parent=0
    #allocation3 [shape = 'u8[32768]{0}', space=vmem, size = 0x8000, scoped, tag = 'input window, operand 0, single buffered']
    #allocation4 [shape = 's32[1]{0}', space=sflag, size = 0x4, scoped, tag = 'scoped memory for tpu_custom_call.1']
    #allocation5 [shape = 's32[1]{0}', space=sflag, size = 0x4, scoped, tag = 'scoped memory for tpu_custom_call.1']
    #allocation6 [shape = 'u8[1024]{0}', space=vmem, size = 0x400, scoped, tag = 'output window, operand 0, single buffered']
    %12 = vsyncpa [#allocation4], 0
    %13 = vsyncpa [#allocation5], 0
    // Predicated region
    $region2: #{tpu_custom_call.1} parent=1 // pred_check
      _
    $region3: #{tpu_custom_call.1} parent=1 // pred_check_branch
      %15 = sbr.rel (0) target = $region5
    $region4: #{tpu_custom_call.1} parent=1 // pred_region
      %s17 = ssub.s32 1024, 1024
      %18 = vsyncadd [#allocation4], %s17
      %s19 = sshll.u32 [#allocation3], 4
      %s20 = int_to_ptr.vmem [resolvable:$true] %s19
      %25 = dma.hbm_to_vmem [thread:$0]  %s0, 1024, %s20, [#allocation4], 256, 256, 16
    $region5: #{tpu_custom_call.1} parent=1 // pred_fallthru
      _
    // Predicated region
    $region6: #{tpu_custom_call.1} parent=1 // pred_check
      _
    $region7: #{tpu_custom_call.1} parent=1 // pred_check_branch
      %27 = sbr.rel (0) target = $region9
    $region8: #{tpu_custom_call.1} parent=1 // pred_region
      _
    $region9: #{tpu_custom_call.1} parent=1 // pred_fallthru
      _
    // Predicated region
    $region10: #{tpu_custom_call.1} parent=1 // pred_check
      _
    $region11: #{tpu_custom_call.1} parent=1 // pred_check_branch
      %29 = sbr.rel (0) target = $region13
    $region12: #{tpu_custom_call.1} parent=1 // pred_region
      _
    $region13: #{tpu_custom_call.1} parent=1 // pred_fallthru
      _
    // Predicated region
    $region14: #{tpu_custom_call.1} parent=1 // pred_check
      _
    $region15: #{tpu_custom_call.1} parent=1 // pred_check_branch
      %31 = sbr.rel (0) target = $region17
    $region16: #{tpu_custom_call.1} parent=1 // pred_region
      _
    $region17: #{tpu_custom_call.1} parent=1 // pred_fallthru
      _
    // Predicated region
    $region18: #{tpu_custom_call.1} parent=1 // pred_check
      _
    $region19: #{tpu_custom_call.1} parent=1 // pred_check_branch
      %33 = sbr.rel (0) target = $region21
    $region20: #{tpu_custom_call.1} parent=1 // pred_region
      _
    $region21: #{tpu_custom_call.1} parent=1 // pred_fallthru
      _
    // Predicated region
    $region22: #{tpu_custom_call.1} parent=1 // pred_check
      _
    $region23: #{tpu_custom_call.1} parent=1 // pred_check_branch
      %35 = sbr.rel (0) target = $region25
    $region24: #{tpu_custom_call.1} parent=1 // pred_region
      %36 = dma.done [#allocation4], 1024
    $region25: #{tpu_custom_call.1} parent=1 // pred_fallthru
      _
    %v37 = vld [vmem:[%s1] sm:$0xff]
    %v38 = vld [vmem:[#allocation3] sm:$0xff]
    %v39 = vld [vmem:[#allocation3 + $0x8] sm:$0xff]
    %v40 = vld [vmem:[#allocation3 + $0x10] sm:$0xff]
    %v41 = vld [vmem:[#allocation3 + $0x18] sm:$0xff]
    %v42 = vld [vmem:[#allocation3 + $0x20] sm:$0xff]
    %v43 = vld [vmem:[#allocation3 + $0x28] sm:$0xff]
    %v44 = vld [vmem:[#allocation3 + $0x30] sm:$0xff]
    %v45 = vld [vmem:[#allocation3 + $0x38] sm:$0xff]
    %v46 = vld [vmem:[%s2] sm:$0xff]
    %48 = vset.pattern.permute.xlu0 0
    %49 = vperm.xlu0 %48, %v46
    %v50 = vpop.permute.xlu0 %49
    %vm52 = vcmask 261120
    %v54 = vsel %vm52, %v37, 0
    %56 = vmatprep.subr.mxu0 0.0
    %57 = vmatpush1.msra.mxu0 0.0
    %58 = vmatprep.subr.mxu0 0.0
    %59 = vmatpush1.msra.mxu0 0.0
    %60 = vmatprep.subr.mxu0 0.0
    %61 = vmatpush1.msra.mxu0 0.0
    %62 = vmatprep.subr.mxu0 0.0
    %63 = vmatpush1.msra.mxu0 0.0
    %64 = vmatprep.subr.mxu0 0.0
    %65 = vmatpush1.msra.mxu0 0.0
    %66 = vmatprep.subr.mxu0 0.0
    %67 = vmatpush1.msra.mxu0 0.0
    %68 = vmatprep.subr.mxu0 0.0
    %69 = vmatpush1.msra.mxu0 0.0
    %70 = vmatprep.subr.mxu0 0.0
    %71 = vmatpush1.msra.mxu0 0.0
    %72 = vmatprep.subr.mxu0 0.0
    %73 = vmatpush1.msra.mxu0 0.0
    %74 = vmatprep.subr.mxu0 0.0
    %75 = vmatpush1.msra.mxu0 0.0
    %76 = vmatprep.subr.mxu0 0.0
    %77 = vmatpush1.msra.mxu0 0.0
    %78 = vmatprep.subr.mxu0 0.0
    %79 = vmatpush1.msra.mxu0 0.0
    %80 = vmatprep.subr.mxu0 %v45
    %81 = vmatpush1.msra.mxu0 %v44
    %82 = vmatprep.subr.mxu0 %v43
    %83 = vmatpush1.msra.mxu0 %v42
    %84 = vmatprep.subr.mxu0 %v41
    %85 = vmatpush1.msra.mxu0 %v40
    %86 = vmatprep.subr.mxu0 %v39
    %87 = vmatpush1.msra.mxu0 %v38
    %88 = vmatprep.subr.mxu0 0.0
    %89 = vmatpush2.msra.mxu0 0.0
    %90 = vmatprep.subr.mxu0 0.0
    %91 = vmatpush2.msra.mxu0 0.0
    %92 = vmatprep.subr.mxu0 0.0
    %93 = vmatpush2.msra.mxu0 0.0
    %94 = vmatprep.subr.mxu0 0.0
    %95 = vmatpush2.msra.mxu0 0.0
    %96 = vmatprep.subr.mxu0 0.0
    %97 = vmatpush2.msra.mxu0 0.0
    %98 = vmatprep.subr.mxu0 0.0
    %99 = vmatpush2.msra.mxu0 0.0
    %100 = vmatprep.subr.mxu0 0.0
    %101 = vmatpush2.msra.mxu0 0.0
    %102 = vmatprep.subr.mxu0 0.0
    %103 = vmatpush2.msra.mxu0 0.0
    %104 = vmatprep.subr.mxu0 0.0
    %105 = vmatpush2.msra.mxu0 0.0
    %106 = vmatprep.subr.mxu0 0.0
    %107 = vmatpush2.msra.mxu0 0.0
    %108 = vmatprep.subr.mxu0 0.0
    %109 = vmatpush2.msra.mxu0 0.0
    %110 = vmatprep.subr.mxu0 0.0
    %111 = vmatpush2.msra.mxu0 0.0
    %112 = vmatprep.subr.mxu0 0.0
    %113 = vmatpush2.msra.mxu0 0.0
    %114 = vmatprep.subr.mxu0 0.0
    %115 = vmatpush2.msra.mxu0 0.0
    %116 = vmatprep.subr.mxu0 0.0
    %117 = vmatpush2.msra.mxu0 0.0
    %118 = vmatprep.subr.mxu0 0.0
    %119 = vmatpush2.msra.mxu0 0.0
    %120 = vmatprep.mubr.f32.mxu0 0.0
    %121 = vmatmul.mubr.f32.gmra.mxu0 %v54
    %v122 = vpop.f32.mrf.mxu0
    %v123 = vadd.f32 %v50, %v122
    %v124 = vpop.f32.mrf.mxu0
    %v125 = vadd.f32 %v50, %v124
    %126 = vdwg.mxu0
    %v127 = vmax.f32 %v123, 0.0
    %v128 = vmax.f32 %v125, 0.0
    %v129 = vld [vmem:[%s3] sm:$0xff]
    %131 = vset.pattern.permute.xlu0 0
    %132 = vperm.xlu0 %131, %v129
    %v133 = vpop.permute.xlu0 %132
    %v135 = vmul.f32 %v127, %v133
    %v136 = vmul.f32 %v128, %v133
    %v137 = vrot.slane %v135, 4
    %v138 = vadd.f32 %v135, %v137
    %v139 = vrot.slane %v138, 2
    %v140 = vadd.f32 %v138, %v139
    %v141 = vrot.slane %v140, 1
    %v142 = vadd.f32 %v140, %v141
    %v143 = vrot.slane %v136, 4
    %v144 = vadd.f32 %v136, %v143
    %v145 = vrot.slane %v144, 2
    %v146 = vadd.f32 %v144, %v145
    %v147 = vrot.slane %v146, 1
    %v148 = vadd.f32 %v146, %v147
    %v149 = vld [vmem:[#allocation2] sm:$0x1]
    %151 = vset.pattern.permute.xlu0 0
    %152 = vperm.xlu0 %151, %v149
    %v153 = vpop.permute.xlu0 %152
    %v155 = vlaneseq
    %v156 = vshrl.u32 %v155, 7
    %v157 = vsub.s32 0, %v156
    %v158 = vrot.slane %v153, %v157
    %v159 = vadd.f32 %v142, %v158
    %v160 = vadd.f32 %v148, %v158
    %v161 = vmax.f32 %v159, 0.0
    %v162 = vmax.f32 %v160, 0.0
    %v163 = vsub.f32 0.0, %v161
    %v164 = vsub.f32 0.0, %v162
    %v165 = vmul.f32 %v163, 1.442695
    %v166 = vpow.pop %v165
    %v167 = vmul.f32 %v164, 1.442695
    %v168 = vpow.pop %v167
    %v169 = vadd.f32 %v166, 1.0
    %v170 = vadd.f32 %v168, 1.0
    %v171 = vrcp.pop %v169
    %v172 = vrcp.pop %v170
    %v175 = vcombine.low %v171, %v172
    %v177 = vunpack.c.l.s4 1966171168
    %v178 = vunpack.c.0.s8 %v177
    %v179 = vlaneseq
    %v180 = vshrl.u32 %v179, 7
    %v181 = vsub.s32 %v178, %v180
    %v182 = vrot.slane %v175, %v181
    %v184 = vunpack.c.l.s4 1966171168
    %v185 = vunpack.c.0.s8 %v184
    %v186 = vlaneseq
    %v187 = vshrl.u32 %v186, 7
    %v188 = vsub.s32 %v185, %v187
    %v189 = vrot.slane %v182, %v188
    %v191 = vlaneseq
    %vm192 = vcmp.ge.s32.totalorder %v191, 0
    %vm193 = vcmp.lt.s32.totalorder %v191, 256
    %vm194 = vmand %vm192, %vm193
    %195 = vst.msk [vmem:[#allocation6] sm:$0x3] %vm194, %v189
    // Predicated region
    $region26: #{tpu_custom_call.1} parent=1 // pred_check
      _
    $region27: #{tpu_custom_call.1} parent=1 // pred_check_branch
      %197 = sbr.rel (0) target = $region29
    $region28: #{tpu_custom_call.1} parent=1 // pred_region
      %s199 = ssub.s32 32, 32
      %200 = vsyncadd [#allocation5], %s199
      %s202 = sshll.u32 [#allocation6], 4
      %s203 = int_to_ptr.vmem [resolvable:$true] %s202
      %205 = dma.vmem_to_hbm [thread:$0]  %s203, 32, %s5, [#allocation5]
    $region29: #{tpu_custom_call.1} parent=1 // pred_fallthru
      _
    // Predicated region
    $region30: #{tpu_custom_call.1} parent=1 // pred_check
      _
    $region31: #{tpu_custom_call.1} parent=1 // pred_check_branch
      %207 = sbr.rel (0) target = $region33
    $region32: #{tpu_custom_call.1} parent=1 // pred_region
      %208 = dma.done [#allocation5], 32
    $region33: #{tpu_custom_call.1} parent=1 // pred_fallthru
      _
    %209 = vsyncpa [#allocation4], 1
    %210 = vsyncpa [#allocation5], 1

</llo_original>
